<compile_context>
chip_gen: v6e
topology: v6e:2x2x1
jax: 0.10.0
libtpu: 0.0.40
codegen_flags: <defaults>
</compile_context>

<pallas_src>
import functools

import jax
import jax.numpy as jnp
from jax.experimental import pallas as pl
from jax.experimental.pallas import tpu as pltpu


def _vq_kernel(x_ref, cb_ref, cbsq_ref, q_ref, err_ref):
    """Per-tile vector quantization.

    x_ref:    (TN, D) f32 tile of flattened inputs           (VMEM)
    cb_ref:   (K, D)  f32 full codebook                      (VMEM, resident)
    cbsq_ref: (1, K)  f32 precomputed ||c_k||^2              (VMEM, resident)
    q_ref:    (TN, D) f32 quantized output tile              (VMEM)
    err_ref:  (TN, 1) f32 per-row squared error              (VMEM)
    """
    x = x_ref[...]                                   # (TN, D)
    cb = cb_ref[...]                                 # (K, D)
    cb_sq = cbsq_ref[...]                            # (1, K)

    # Distances for argmin only need ||c||^2 - 2 x.c (per-row ||x||^2 is a
    # constant offset and does not change the argmin).
    xc = jax.lax.dot_general(                        # MXU, (TN, K)
        x, cb, (((1,), (1,)), ((), ())),
        preferred_element_type=jnp.float32)
    dist = cb_sq - 2.0 * xc                          # (TN, K)

    # First-minimal-index argmin, built from min + iota + where so it lowers
    # cleanly on TPU (no 1-D iota, no dynamic gather).
    k = cb.shape[0]
    iota_k = jax.lax.broadcasted_iota(jnp.int32, dist.shape, 1)   # (TN, K)
    min_d = jnp.min(dist, axis=1, keepdims=True)                  # (TN, 1)
    idx = jnp.min(jnp.where(dist <= min_d, iota_k, k),
                  axis=1, keepdims=True)                          # (TN, 1)

    # Gather codebook rows via one-hot matmul (MXU-friendly).
    onehot = (iota_k == idx).astype(jnp.float32)                  # (TN, K)
    q = jnp.dot(onehot, cb, preferred_element_type=jnp.float32)   # (TN, D)
    q_ref[...] = q

    # Per-row squared error, exactly as PyTorch: sum((q - x)^2, axis=-1).
    diff = q - x
    err_ref[...] = jnp.sum(diff * diff, axis=1, keepdims=True)    # (TN, 1)


def _round_up(x, m):
    return ((x + m - 1) // m) * m


def vector_quantizer_forward(x, codebook, commitment_cost, *, max_tile_n=8192):
    """Forward pass of VectorQuantizer.

    x:        (..., D) float, last dim == embedding_dim
    codebook: (K, D)   float
    Returns (quantized, commitment_loss) with quantized shaped/typed like x.
    """
    orig_shape = x.shape
    orig_dtype = x.dtype
    k, d = codebook.shape
    flat = x.reshape(-1, d).astype(jnp.float32)
    n = flat.shape[0]

    # Largest multiple-of-8 tile up to max_tile_n rows; pad N so the grid
    # covers everything (padded rows are dropped on the host).
    tile_n = min(max_tile_n, _round_up(n, 8))
    num_tiles = pl.cdiv(n, tile_n)
    n_pad = num_tiles * tile_n
    if n_pad != n:
        flat = jnp.pad(flat, ((0, n_pad - n), (0, 0)))

    codebook_f = codebook.astype(jnp.float32)
    cb_sq = jnp.sum(codebook_f * codebook_f, axis=1).reshape(1, k)

    q_flat, err = pl.pallas_call(
        _vq_kernel,
        out_shape=(
            jax.ShapeDtypeStruct((n_pad, d), jnp.float32),
            jax.ShapeDtypeStruct((n_pad, 1), jnp.float32),
        ),
        grid=(num_tiles,),
        in_specs=[
            pl.BlockSpec((tile_n, d), lambda i: (i, 0)),   # x row tile
            pl.BlockSpec((k, d), lambda i: (0, 0)),        # full codebook
            pl.BlockSpec((1, k), lambda i: (0, 0)),        # ||c_k||^2
        ],
        out_specs=(
            pl.BlockSpec((tile_n, d), lambda i: (i, 0)),   # quantized tile
            pl.BlockSpec((tile_n, 1), lambda i: (i, 0)),   # per-row sq. error
        ),
        compiler_params=pltpu.CompilerParams(
            dimension_semantics=("parallel",),  # disjoint tiles -> megacore OK
        ),
    )(flat, codebook_f, cb_sq)

    # commitment_loss = commitment_cost * mean((quantized - x)**2)
    sse = jnp.sum(err[:n, 0])
    commitment_loss = commitment_cost * sse / (n * d)

    quantized = q_flat[:n].reshape(orig_shape).astype(orig_dtype)
    # Straight-through estimator: quantized = x + (quantized - x).detach().
    # Forward values are identical; gradient routing is irrelevant here.
    # TODO(synk): quantization_dropout > 0 would need pltpu.prng_* in-kernel;
    # config.quantization_dropout == 0 here so the dropout branch is skipped.
    return quantized, commitment_loss


if __name__ == "__main__":
    # Synthetic config: num_codebooks=16, embedding_dim=32,
    # commitment_cost=0.25, quantization_dropout=0.0
    num_codebooks = 16
    embedding_dim = 32
    commitment_cost = 0.25

    key = jax.random.PRNGKey(0)
    k_cb, k_x = jax.random.split(key)
    codebook = jax.random.normal(k_cb, (num_codebooks, embedding_dim),
                                 dtype=jnp.float32)
    # x: (batch=2, seq=64, hidden=embedding_dim)  ->  N = 128 flattened rows
    x = jax.random.normal(k_x, (2, 64, embedding_dim), dtype=jnp.float32)

    fwd = jax.jit(functools.partial(vector_quantizer_forward,
                                    commitment_cost=commitment_cost))
    quantized, loss = fwd(x, codebook)
    jax.block_until_ready((quantized, loss))

    # Sanity check against a pure-JAX reference (full PyTorch distance formula).
    flat = x.reshape(-1, embedding_dim)
    dist = (jnp.sum(flat ** 2, axis=1, keepdims=True)
            + jnp.sum(codebook ** 2, axis=1)
            - 2.0 * flat @ codebook.T)
    idx = jnp.argmin(dist, axis=1)
    q_ref = codebook[idx].reshape(x.shape)
    loss_ref = commitment_cost * jnp.mean((q_ref - x) ** 2)
    assert jnp.allclose(quantized, q_ref, atol=1e-5), "quantized mismatch"
    assert jnp.allclose(loss, loss_ref, atol=1e-4, rtol=1e-4), "loss mismatch"

    print("KERNEL_OK")
</pallas_src>

<mosaic_0001>
module attributes {stable_mosaic.version = 11 : i64} {
  func.func @_vq_kernel(%arg0: i32, %arg1: memref<128x32xf32, #tpu.memory_space<vmem>>, %arg2: memref<16x32xf32, #tpu.memory_space<vmem>>, %arg3: memref<1x16xf32, #tpu.memory_space<vmem>>, %arg4: memref<128x32xf32, #tpu.memory_space<vmem>>, %arg5: memref<128x1xf32, #tpu.memory_space<vmem>>) attributes {dimension_semantics = [#tpu.dimension_semantics<parallel>], iteration_bounds = array<i64: 1>, scalar_prefetch = 0 : i64, scratch_operands = 0 : i64, tpu.core_type = #tpu.core_type<tc>, window_params = [{transform_indices = @transform_0, window_bounds = array<i64: 128, 32>}, {pipeline_mode = #tpu.pipeline_mode<synchronous>, transform_indices = @transform_1, window_bounds = array<i64: 16, 32>}, {pipeline_mode = #tpu.pipeline_mode<synchronous>, transform_indices = @transform_2, window_bounds = array<i64: 1, 16>}, {transform_indices = @transform_3, window_bounds = array<i64: 128, 32>}, {transform_indices = @transform_4, window_bounds = array<i64: 128, 1>}]} {
    %c0 = arith.constant 0 : index
    %c0_0 = arith.constant 0 : index
    %0 = vector.load %arg1[%c0, %c0_0] : memref<128x32xf32, #tpu.memory_space<vmem>>, vector<128x32xf32>
    %c0_1 = arith.constant 0 : index
    %c0_2 = arith.constant 0 : index
    %1 = vector.load %arg2[%c0_1, %c0_2] : memref<16x32xf32, #tpu.memory_space<vmem>>, vector<16x32xf32>
    %c0_3 = arith.constant 0 : index
    %c0_4 = arith.constant 0 : index
    %2 = vector.load %arg3[%c0_3, %c0_4] : memref<1x16xf32, #tpu.memory_space<vmem>>, vector<1x16xf32>
    %cst = arith.constant dense<0.000000e+00> : vector<128x16xf32>
    %3 = tpu.matmul %0, %1, %cst {dimension_numbers = #tpu.dot_dimension_numbers<[1], [1], [0], [0], [0, 0, 1, 0], [], []>} : vector<128x32xf32>, vector<16x32xf32>, vector<128x16xf32> -> vector<128x16xf32>
    %cst_5 = arith.constant 2.000000e+00 : f32
    %4 = vector.broadcast %cst_5 : f32 to vector<128x16xf32>
    %5 = arith.mulf %4, %3 : vector<128x16xf32>
    %6 = vector.broadcast %2 : vector<1x16xf32> to vector<128x16xf32>
    %7 = arith.subf %6, %5 : vector<128x16xf32>
    %8 = tpu.iota {dimensions = array<i32: 1>} : vector<128x16xi32>
    %cst_6 = arith.constant dense<0x7F800000> : vector<128xf32>
    %9 = vector.multi_reduction <minimumf>, %7, %cst_6 [1] : vector<128x16xf32> to vector<128xf32>
    %10 = vector.shape_cast %9 : vector<128xf32> to vector<128x1xf32>
    %11 = vector.broadcast %10 : vector<128x1xf32> to vector<128x16xf32>
    %12 = arith.cmpf ole, %7, %11 : vector<128x16xf32>
    %c16_i32 = arith.constant 16 : i32
    %13 = vector.broadcast %c16_i32 : i32 to vector<128x16xi32>
    %14 = arith.select %12, %8, %13 : vector<128x16xi1>, vector<128x16xi32>
    %cst_7 = arith.constant dense<2147483647> : vector<128xi32>
    %15 = vector.multi_reduction <minsi>, %14, %cst_7 [1] : vector<128x16xi32> to vector<128xi32>
    %16 = vector.shape_cast %15 : vector<128xi32> to vector<128x1xi32>
    %17 = vector.broadcast %16 : vector<128x1xi32> to vector<128x16xi32>
    %18 = arith.cmpi eq, %8, %17 : vector<128x16xi32>
    %19 = arith.extui %18 : vector<128x16xi1> to vector<128x16xi32>
    %20 = arith.sitofp %19 : vector<128x16xi32> to vector<128x16xf32>
    %cst_8 = arith.constant dense<0.000000e+00> : vector<128x32xf32>
    %21 = tpu.matmul %20, %1, %cst_8 {dimension_numbers = #tpu.dot_dimension_numbers<[1], [0], [0], [1], [0, 0, 1, 1], [], []>} : vector<128x16xf32>, vector<16x32xf32>, vector<128x32xf32> -> vector<128x32xf32>
    %c0_9 = arith.constant 0 : index
    %c0_10 = arith.constant 0 : index
    %22 = vector.load %arg4[%c0_9, %c0_10] : memref<128x32xf32, #tpu.memory_space<vmem>>, vector<128x32xf32>
    tpu.vector_store %arg4[%c0_9, %c0_10], %21 {strides = array<i32>} : memref<128x32xf32, #tpu.memory_space<vmem>>, vector<128x32xf32>,
    %23 = arith.subf %21, %0 : vector<128x32xf32>
    %24 = arith.mulf %23, %23 : vector<128x32xf32>
    %cst_11 = arith.constant dense<0.000000e+00> : vector<128xf32>
    %25 = vector.multi_reduction <add>, %24, %cst_11 [1] : vector<128x32xf32> to vector<128xf32>
    %26 = vector.shape_cast %25 : vector<128xf32> to vector<128x1xf32>
    %c0_12 = arith.constant 0 : index
    %c0_13 = arith.constant 0 : index
    %27 = vector.load %arg5[%c0_12, %c0_13] : memref<128x1xf32, #tpu.memory_space<vmem>>, vector<128x1xf32>
    tpu.vector_store %arg5[%c0_12, %c0_13], %26 {strides = array<i32>} : memref<128x1xf32, #tpu.memory_space<vmem>>, vector<128x1xf32>,
    return
  }
  func.func @transform_0(%arg0: i32) -> (i32, i32) {
    %c0_i32 = arith.constant 0 : i32
    %c0_i32_0 = arith.constant 0 : i32
    return %arg0, %c0_i32 : i32, i32
  }
  func.func @transform_1(%arg0: i32) -> (i32, i32) {
    %c0_i32 = arith.constant 0 : i32
    %c0_i32_0 = arith.constant 0 : i32
    %c0_i32_1 = arith.constant 0 : i32
    return %c0_i32, %c0_i32_0 : i32, i32
  }
  func.func @transform_2(%arg0: i32) -> (i32, i32) {
    %c0_i32 = arith.constant 0 : i32
    %c0_i32_0 = arith.constant 0 : i32
    %c0_i32_1 = arith.constant 0 : i32
    return %c0_i32, %c0_i32_0 : i32, i32
  }
  func.func @transform_3(%arg0: i32) -> (i32, i32) {
    %c0_i32 = arith.constant 0 : i32
    %c0_i32_0 = arith.constant 0 : i32
    return %arg0, %c0_i32 : i32, i32
  }
  func.func @transform_4(%arg0: i32) -> (i32, i32) {
    %c0_i32 = arith.constant 0 : i32
    %c0_i32_0 = arith.constant 0 : i32
    return %arg0, %c0_i32 : i32, i32
  }
}

</mosaic_0001>

<llo_original>
// kernel: vector_quantizer_forward.1
$region0: #{vector_quantizer_forward.1}
  #allocation0 [shape = 'u32[]', space=smem, size = 0x4, offset = 0x4, fixed_abs, tag = 'smem constant byte address 0x4 - core index']
  #allocation1 [shape = 'u32[144,128]{1,0:T(1,128)}', space=vmem, size = 0x12000, scoped, tag = 'internal scratch']
  %s0 = inlined_call_operand.vmem [shape: f32[128,32], index: 0, kind: input, shape index: {}]
  %s1 = inlined_call_operand.vmem [shape: f32[16,32], index: 1, kind: input, shape index: {}]
  %s2 = inlined_call_operand.vmem [shape: f32[1,16], index: 2, kind: input, shape index: {}]
  %s3 = inlined_call_operand.vmem [shape: f32[128,32], index: 3, kind: output, shape index: {0}]
  %s4 = inlined_call_operand.vmem [shape: f32[128,1], index: 4, kind: output, shape index: {1}]
  %5 = xla_tuple %s3, %s4
  %s6 = sld [smem:[#allocation0]]
  $region30: #{vector_quantizer_forward.1} parent=0
    _
  %s8 = ssub.s32 1, %s6
  %s9 = scalar_select 0, %s8, %s6
  // Predicated region
  $region2: #{vector_quantizer_forward.1} parent=0 // pred_check
    _
  $region3: #{vector_quantizer_forward.1} parent=0 // pred_check_branch
    %11 = sbr.rel (0) target = $region5
  $region4: #{vector_quantizer_forward.1} parent=0 // pred_region
    _
  $region5: #{vector_quantizer_forward.1} parent=0 // pred_fallthru
    _
  // Predicated region
  $region6: #{vector_quantizer_forward.1} parent=0 // pred_check
    _
  $region7: #{vector_quantizer_forward.1} parent=0 // pred_check_branch
    %13 = sbr.rel (0) target = $region9
  $region8: #{vector_quantizer_forward.1} parent=0 // pred_region
    _
  $region9: #{vector_quantizer_forward.1} parent=0 // pred_fallthru
    _
  // Predicated region
  $region10: #{vector_quantizer_forward.1} parent=0 // pred_check
    _
  $region11: #{vector_quantizer_forward.1} parent=0 // pred_check_branch
    %15 = sbr.rel (0) target = $region13
  $region12: #{vector_quantizer_forward.1} parent=0 // pred_region
    _
  $region13: #{vector_quantizer_forward.1} parent=0 // pred_fallthru
    _
  %v16 = vld [vmem:[%s0] sm:$0xff]
  %v17 = vld [vmem:[%s0 + $0x8] sm:$0xff]
  %v18 = vld [vmem:[%s0 + $0x10] sm:$0xff]
  %v19 = vld [vmem:[%s0 + $0x18] sm:$0xff]
  %v20 = vld [vmem:[%s0 + $0x20] sm:$0xff]
  %v21 = vld [vmem:[%s0 + $0x28] sm:$0xff]
  %v22 = vld [vmem:[%s0 + $0x30] sm:$0xff]
  %v23 = vld [vmem:[%s0 + $0x38] sm:$0xff]
  %v24 = vld [vmem:[%s0 + $0x40] sm:$0xff]
  %v25 = vld [vmem:[%s0 + $0x48] sm:$0xff]
  %v26 = vld [vmem:[%s0 + $0x50] sm:$0xff]
  %v27 = vld [vmem:[%s0 + $0x58] sm:$0xff]
  %v28 = vld [vmem:[%s0 + $0x60] sm:$0xff]
  %v29 = vld [vmem:[%s0 + $0x68] sm:$0xff]
  %v30 = vld [vmem:[%s0 + $0x70] sm:$0xff]
  %v31 = vld [vmem:[%s0 + $0x78] sm:$0xff]
  %v32 = vld [vmem:[%s1] sm:$0xff]
  %v33 = vld [vmem:[%s1 + $0x8] sm:$0xff]
  %v34 = vld [vmem:[%s2] sm:$0x1]
  %vm35 = vcmask 261120
  %v37 = vsel %vm35, %v16, 0
  %v40 = vsel %vm35, %v17, 0
  %v43 = vsel %vm35, %v18, 0
  %v46 = vsel %vm35, %v19, 0
  %v49 = vsel %vm35, %v20, 0
  %v52 = vsel %vm35, %v21, 0
  %v55 = vsel %vm35, %v22, 0
  %v58 = vsel %vm35, %v23, 0
  %v61 = vsel %vm35, %v24, 0
  %v64 = vsel %vm35, %v25, 0
  %v67 = vsel %vm35, %v26, 0
  %v70 = vsel %vm35, %v27, 0
  %v73 = vsel %vm35, %v28, 0
  %v76 = vsel %vm35, %v29, 0
  %v79 = vsel %vm35, %v30, 0
  %v82 = vsel %vm35, %v31, 0
  %v85 = vsel %vm35, %v32, 0
  %v88 = vsel %vm35, %v33, 0
  %90 = vmatprep.subr.mxu0 0.0
  %91 = vmatpush1.xpose.msra.mxu0 0.0
  %92 = vmatprep.subr.mxu0 0.0
  %93 = vmatpush1.xpose.msra.mxu0 0.0
  %94 = vmatprep.subr.mxu0 0.0
  %95 = vmatpush1.xpose.msra.mxu0 0.0
  %96 = vmatprep.subr.mxu0 0.0
  %97 = vmatpush1.xpose.msra.mxu0 0.0
  %98 = vmatprep.subr.mxu0 0.0
  %99 = vmatpush1.xpose.msra.mxu0 0.0
  %100 = vmatprep.subr.mxu0 0.0
  %101 = vmatpush1.xpose.msra.mxu0 0.0
  %102 = vmatprep.subr.mxu0 0.0
  %103 = vmatpush1.xpose.msra.mxu0 0.0
  %104 = vmatprep.subr.mxu0 0.0
  %105 = vmatpush1.xpose.msra.mxu0 0.0
  %106 = vmatprep.subr.mxu0 0.0
  %107 = vmatpush1.xpose.msra.mxu0 0.0
  %108 = vmatprep.subr.mxu0 0.0
  %109 = vmatpush1.xpose.msra.mxu0 0.0
  %110 = vmatprep.subr.mxu0 0.0
  %111 = vmatpush1.xpose.msra.mxu0 0.0
  %112 = vmatprep.subr.mxu0 0.0
  %113 = vmatpush1.xpose.msra.mxu0 0.0
  %114 = vmatprep.subr.mxu0 0.0
  %115 = vmatpush1.xpose.msra.mxu0 0.0
  %116 = vmatprep.subr.mxu0 0.0
  %117 = vmatpush1.xpose.msra.mxu0 0.0
  %118 = vmatprep.subr.mxu0 0.0
  %119 = vmatpush1.xpose.msra.mxu0 %v88
  %120 = vmatprep.subr.mxu0 0.0
  %121 = vmatpush1.xpose.msra.mxu0 %v85
  %122 = vmatprep.subr.mxu0 0.0
  %123 = vmatpush2.xpose.msra.mxu0 0.0
  %124 = vmatprep.subr.mxu0 0.0
  %125 = vmatpush2.xpose.msra.mxu0 0.0
  %126 = vmatprep.subr.mxu0 0.0
  %127 = vmatpush2.xpose.msra.mxu0 0.0
  %128 = vmatprep.subr.mxu0 0.0
  %129 = vmatpush2.xpose.msra.mxu0 0.0
  %130 = vmatprep.subr.mxu0 0.0
  %131 = vmatpush2.xpose.msra.mxu0 0.0
  %132 = vmatprep.subr.mxu0 0.0
  %133 = vmatpush2.xpose.msra.mxu0 0.0
  %134 = vmatprep.subr.mxu0 0.0
  %135 = vmatpush2.xpose.msra.mxu0 0.0
  %136 = vmatprep.subr.mxu0 0.0
  %137 = vmatpush2.xpose.msra.mxu0 0.0
  %138 = vmatprep.subr.mxu0 0.0
  %139 = vmatpush2.xpose.msra.mxu0 0.0
  %140 = vmatprep.subr.mxu0 0.0
  %141 = vmatpush2.xpose.msra.mxu0 0.0
  %142 = vmatprep.subr.mxu0 0.0
  %143 = vmatpush2.xpose.msra.mxu0 0.0
  %144 = vmatprep.subr.mxu0 0.0
  %145 = vmatpush2.xpose.msra.mxu0 0.0
  %146 = vmatprep.subr.mxu0 0.0
  %147 = vmatpush2.xpose.msra.mxu0 0.0
  %148 = vmatprep.subr.mxu0 0.0
  %149 = vmatpush2.xpose.msra.mxu0 0.0
  %150 = vmatprep.subr.mxu0 0.0
  %151 = vmatpush2.xpose.msra.mxu0 0.0
  %152 = vmatprep.subr.mxu0 0.0
  %153 = vmatpush2.xpose.msra.mxu0 0.0
  %154 = vmatprep.mubr.f32.mxu0 0.0
  %155 = vmatmul.mubr.f32.gmra.mxu0 %v37
  %v156 = vpop.f32.mrf.mxu0
  %v157 = vadd.f32 0.0, %v156
  %v158 = vpop.f32.mrf.mxu0
  %159 = vmatprep.mubr.f32.mxu0 0.0
  %160 = vmatmul.mubr.f32.gmra.mxu0 %v40
  %v161 = vpop.f32.mrf.mxu0
  %v162 = vadd.f32 0.0, %v161
  %v163 = vpop.f32.mrf.mxu0
  %164 = vmatprep.mubr.f32.mxu0 0.0
  %165 = vmatmul.mubr.f32.gmra.mxu0 %v43
  %v166 = vpop.f32.mrf.mxu0
  %v167 = vadd.f32 0.0, %v166
  %v168 = vpop.f32.mrf.mxu0
  %169 = vmatprep.mubr.f32.mxu0 0.0
  %170 = vmatmul.mubr.f32.gmra.mxu0 %v46
  %v171 = vpop.f32.mrf.mxu0
  %v172 = vadd.f32 0.0, %v171
  %v173 = vpop.f32.mrf.mxu0
  %174 = vmatprep.mubr.f32.mxu0 0.0
  %175 = vmatmul.mubr.f32.gmra.mxu0 %v49
  %v176 = vpop.f32.mrf.mxu0
  %v177 = vadd.f32 0.0, %v176
  %v178 = vpop.f32.mrf.mxu0
  %179 = vmatprep.mubr.f32.mxu0 0.0
  %180 = vmatmul.mubr.f32.gmra.mxu0 %v52
  %v181 = vpop.f32.mrf.mxu0
  %v182 = vadd.f32 0.0, %v181
  %v183 = vpop.f32.mrf.mxu0
  %184 = vmatprep.mubr.f32.mxu0 0.0
  %185 = vmatmul.mubr.f32.gmra.mxu0 %v55
  %v186 = vpop.f32.mrf.mxu0
  %v187 = vadd.f32 0.0, %v186
  %v188 = vpop.f32.mrf.mxu0
  %189 = vmatprep.mubr.f32.mxu0 0.0
  %190 = vmatmul.mubr.f32.gmra.mxu0 %v58
  %v191 = vpop.f32.mrf.mxu0
  %v192 = vadd.f32 0.0, %v191
  %v193 = vpop.f32.mrf.mxu0
  %194 = vmatprep.mubr.f32.mxu0 0.0
  %195 = vmatmul.mubr.f32.gmra.mxu0 %v61
  %v196 = vpop.f32.mrf.mxu0
  %v197 = vadd.f32 0.0, %v196
  %v198 = vpop.f32.mrf.mxu0
  %199 = vmatprep.mubr.f32.mxu0 0.0
  %200 = vmatmul.mubr.f32.gmra.mxu0 %v64
  %v201 = vpop.f32.mrf.mxu0
  %v202 = vadd.f32 0.0, %v201
  %v203 = vpop.f32.mrf.mxu0
  %204 = vmatprep.mubr.f32.mxu0 0.0
  %205 = vmatmul.mubr.f32.gmra.mxu0 %v67
  %v206 = vpop.f32.mrf.mxu0
  %v207 = vadd.f32 0.0, %v206
  %v208 = vpop.f32.mrf.mxu0
  %209 = vmatprep.mubr.f32.mxu0 0.0
  %210 = vmatmul.mubr.f32.gmra.mxu0 %v70
  %v211 = vpop.f32.mrf.mxu0
  %v212 = vadd.f32 0.0, %v211
  %v213 = vpop.f32.mrf.mxu0
  %214 = vmatprep.mubr.f32.mxu0 0.0
  %215 = vmatmul.mubr.f32.gmra.mxu0 %v73
  %v216 = vpop.f32.mrf.mxu0
  %v217 = vadd.f32 0.0, %v216
  %v218 = vpop.f32.mrf.mxu0
  %219 = vmatprep.mubr.f32.mxu0 0.0
  %220 = vmatmul.mubr.f32.gmra.mxu0 %v76
  %v221 = vpop.f32.mrf.mxu0
  %v222 = vadd.f32 0.0, %v221
  %v223 = vpop.f32.mrf.mxu0
  %224 = vmatprep.mubr.f32.mxu0 0.0
  %225 = vmatmul.mubr.f32.gmra.mxu0 %v79
  %v226 = vpop.f32.mrf.mxu0
  %v227 = vadd.f32 0.0, %v226
  %v228 = vpop.f32.mrf.mxu0
  %229 = vmatprep.mubr.f32.mxu0 0.0
  %230 = vmatmul.mubr.f32.gmra.mxu0 %v82
  %v231 = vpop.f32.mrf.mxu0
  %v232 = vadd.f32 0.0, %v231
  %v233 = vpop.f32.mrf.mxu0
  %234 = vdwg.mxu0
  %v235 = vmul.f32 %v157, 2.0
  %v236 = vmul.f32 %v162, 2.0
  %v237 = vmul.f32 %v167, 2.0
  %v238 = vmul.f32 %v172, 2.0
  %v239 = vmul.f32 %v177, 2.0
  %v240 = vmul.f32 %v182, 2.0
  %v241 = vmul.f32 %v187, 2.0
  %v242 = vmul.f32 %v192, 2.0
  %v243 = vmul.f32 %v197, 2.0
  %v244 = vmul.f32 %v202, 2.0
  %v245 = vmul.f32 %v207, 2.0
  %v246 = vmul.f32 %v212, 2.0
  %v247 = vmul.f32 %v217, 2.0
  %v248 = vmul.f32 %v222, 2.0
  %v249 = vmul.f32 %v227, 2.0
  %v250 = vmul.f32 %v232, 2.0
  %v252 = vlaneseq
  %v253 = vshrl.u32 %v252, 7
  %v254 = vsub.s32 0, %v253
  %v255 = vrot.slane %v34, %v254
  %v257 = vsub.f32 %v255, %v235
  %v258 = vsub.f32 %v255, %v236
  %v259 = vsub.f32 %v255, %v237
  %v260 = vsub.f32 %v255, %v238
  %v261 = vsub.f32 %v255, %v239
  %v262 = vsub.f32 %v255, %v240
  %v263 = vsub.f32 %v255, %v241
  %v264 = vsub.f32 %v255, %v242
  %v265 = vsub.f32 %v255, %v243
  %v266 = vsub.f32 %v255, %v244
  %v267 = vsub.f32 %v255, %v245
  %v268 = vsub.f32 %v255, %v246
  %v269 = vsub.f32 %v255, %v247
  %v270 = vsub.f32 %v255, %v248
  %v271 = vsub.f32 %v255, %v249
  %v272 = vsub.f32 %v255, %v250
  %v273 = vlaneseq
  %v274 = vand.u32 %v273, 127
  %vm275 = vcmask 130048
  %v276 = vsel %vm275, %v257, inf
  %277 = vmin.xlane.f32.xlu0 %v276
  %v278 = vpop.xlane.xlu0 %277
  %v279 = vsel %vm275, %v258, inf
  %280 = vmin.xlane.f32.xlu0 %v279
  %v281 = vpop.xlane.xlu0 %280
  %v282 = vsel %vm275, %v259, inf
  %283 = vmin.xlane.f32.xlu0 %v282
  %v284 = vpop.xlane.xlu0 %283
  %v285 = vsel %vm275, %v260, inf
  %286 = vmin.xlane.f32.xlu0 %v285
  %v287 = vpop.xlane.xlu0 %286
  %v288 = vsel %vm275, %v261, inf
  %289 = vmin.xlane.f32.xlu0 %v288
  %v290 = vpop.xlane.xlu0 %289
  %v291 = vsel %vm275, %v262, inf
  %292 = vmin.xlane.f32.xlu0 %v291
  %v293 = vpop.xlane.xlu0 %292
  %v294 = vsel %vm275, %v263, inf
  %295 = vmin.xlane.f32.xlu0 %v294
  %v296 = vpop.xlane.xlu0 %295
  %v297 = vsel %vm275, %v264, inf
  %298 = vmin.xlane.f32.xlu0 %v297
  %v299 = vpop.xlane.xlu0 %298
  %v300 = vsel %vm275, %v265, inf
  %301 = vmin.xlane.f32.xlu0 %v300
  %v302 = vpop.xlane.xlu0 %301
  %v303 = vsel %vm275, %v266, inf
  %304 = vmin.xlane.f32.xlu0 %v303
  %v305 = vpop.xlane.xlu0 %304
  %v306 = vsel %vm275, %v267, inf
  %307 = vmin.xlane.f32.xlu0 %v306
  %v308 = vpop.xlane.xlu0 %307
  %v309 = vsel %vm275, %v268, inf
  %310 = vmin.xlane.f32.xlu0 %v309
  %v311 = vpop.xlane.xlu0 %310
  %v312 = vsel %vm275, %v269, inf
  %313 = vmin.xlane.f32.xlu0 %v312
  %v314 = vpop.xlane.xlu0 %313
  %v315 = vsel %vm275, %v270, inf
  %316 = vmin.xlane.f32.xlu0 %v315
  %v317 = vpop.xlane.xlu0 %316
  %v318 = vsel %vm275, %v271, inf
  %319 = vmin.xlane.f32.xlu0 %v318
  %v320 = vpop.xlane.xlu0 %319
  %v321 = vsel %vm275, %v272, inf
  %322 = vmin.xlane.f32.xlu0 %v321
  %v323 = vpop.xlane.xlu0 %322
  %vm324 = vcmp.le.f32.partialorder %v257, %v278
  %vm325 = vcmp.le.f32.partialorder %v258, %v281
  %vm326 = vcmp.le.f32.partialorder %v259, %v284
  %vm327 = vcmp.le.f32.partialorder %v260, %v287
  %vm328 = vcmp.le.f32.partialorder %v261, %v290
  %vm329 = vcmp.le.f32.partialorder %v262, %v293
  %vm330 = vcmp.le.f32.partialorder %v263, %v296
  %vm331 = vcmp.le.f32.partialorder %v264, %v299
  %vm332 = vcmp.le.f32.partialorder %v265, %v302
  %vm333 = vcmp.le.f32.partialorder %v266, %v305
  %vm334 = vcmp.le.f32.partialorder %v267, %v308
  %vm335 = vcmp.le.f32.partialorder %v268, %v311
  %vm336 = vcmp.le.f32.partialorder %v269, %v314
  %vm337 = vcmp.le.f32.partialorder %v270, %v317
  %vm338 = vcmp.le.f32.partialorder %v271, %v320
  %vm339 = vcmp.le.f32.partialorder %v272, %v323
  %v340 = vsel %vm324, %v274, 16
  %v341 = vsel %vm325, %v274, 16
  %v342 = vsel %vm326, %v274, 16
  %v343 = vsel %vm327, %v274, 16
  %v344 = vsel %vm328, %v274, 16
  %v345 = vsel %vm329, %v274, 16
  %v346 = vsel %vm330, %v274, 16
  %v347 = vsel %vm331, %v274, 16
  %v348 = vsel %vm332, %v274, 16
  %v349 = vsel %vm333, %v274, 16
  %v350 = vsel %vm334, %v274, 16
  %v351 = vsel %vm335, %v274, 16
  %v352 = vsel %vm336, %v274, 16
  %v353 = vsel %vm337, %v274, 16
  %v354 = vsel %vm338, %v274, 16
  %v355 = vsel %vm339, %v274, 16
  %v356 = vsel %vm275, %v340, 2147483647
  %v357 = vand.u32 %v356, 65535
  %v358 = vshra.s32 %v356, 16
  %v359 = vcvt.s32.f32 %v357
  %v360 = vcvt.s32.f32 %v358
  %361 = vmin.xlane.f32.xlu0 %v360
  %v362 = vpop.xlane.xlu0 %361
  %vm363 = vcmp.eq.f32.partialorder %v360, %v362
  %v364 = vsel %vm363, %v359, inf
  %365 = vmin.xlane.f32.xlu0 %v364
  %v366 = vpop.xlane.xlu0 %365
  %v367 = vcvt.f32.s32 %v366
  %v368 = vcvt.f32.s32 %v362
  %v369 = vshll.u32 %v368, 16
  %v370 = vadd.s32 %v369, %v367
  %v371 = vsel %vm275, %v341, 2147483647
  %v372 = vand.u32 %v371, 65535
  %v373 = vshra.s32 %v371, 16
  %v374 = vcvt.s32.f32 %v372
  %v375 = vcvt.s32.f32 %v373
  %376 = vmin.xlane.f32.xlu0 %v375
  %v377 = vpop.xlane.xlu0 %376
  %vm378 = vcmp.eq.f32.partialorder %v375, %v377
  %v379 = vsel %vm378, %v374, inf
  %380 = vmin.xlane.f32.xlu0 %v379
  %v381 = vpop.xlane.xlu0 %380
  %v382 = vcvt.f32.s32 %v381
  %v383 = vcvt.f32.s32 %v377
  %v384 = vshll.u32 %v383, 16
  %v385 = vadd.s32 %v384, %v382
  %v386 = vsel %vm275, %v342, 2147483647
  %v387 = vand.u32 %v386, 65535
  %v388 = vshra.s32 %v386, 16
  %v389 = vcvt.s32.f32 %v387
  %v390 = vcvt.s32.f32 %v388
  %391 = vmin.xlane.f32.xlu0 %v390
  %v392 = vpop.xlane.xlu0 %391
  %vm393 = vcmp.eq.f32.partialorder %v390, %v392
  %v394 = vsel %vm393, %v389, inf
  %395 = vmin.xlane.f32.xlu0 %v394
  %v396 = vpop.xlane.xlu0 %395
  %v397 = vcvt.f32.s32 %v396
  %v398 = vcvt.f32.s32 %v392
  %v399 = vshll.u32 %v398, 16
  %v400 = vadd.s32 %v399, %v397
  %v401 = vsel %vm275, %v343, 2147483647
  %v402 = vand.u32 %v401, 65535
  %v403 = vshra.s32 %v401, 16
  %v404 = vcvt.s32.f32 %v402
  %v405 = vcvt.s32.f32 %v403
  %406 = vmin.xlane.f32.xlu0 %v405
  %v407 = vpop.xlane.xlu0 %406
  %vm408 = vcmp.eq.f32.partialorder %v405, %v407
  %v409 = vsel %vm408, %v404, inf
  %410 = vmin.xlane.f32.xlu0 %v409
  %v411 = vpop.xlane.xlu0 %410
  %v412 = vcvt.f32.s32 %v411
  %v413 = vcvt.f32.s32 %v407
  %v414 = vshll.u32 %v413, 16
  %v415 = vadd.s32 %v414, %v412
  %v416 = vsel %vm275, %v344, 2147483647
  %v417 = vand.u32 %v416, 65535
  %v418 = vshra.s32 %v416, 16
  %v419 = vcvt.s32.f32 %v417
  %v420 = vcvt.s32.f32 %v418
  %421 = vmin.xlane.f32.xlu0 %v420
  %v422 = vpop.xlane.xlu0 %421
  %vm423 = vcmp.eq.f32.partialorder %v420, %v422
  %v424 = vsel %vm423, %v419, inf
  %425 = vmin.xlane.f32.xlu0 %v424
  %v426 = vpop.xlane.xlu0 %425
  %v427 = vcvt.f32.s32 %v426
  %v428 = vcvt.f32.s32 %v422
  %v429 = vshll.u32 %v428, 16
  %v430 = vadd.s32 %v429, %v427
  %v431 = vsel %vm275, %v345, 2147483647
  %v432 = vand.u32 %v431, 65535
  %v433 = vshra.s32 %v431, 16
  %v434 = vcvt.s32.f32 %v432
  %v435 = vcvt.s32.f32 %v433
  %436 = vmin.xlane.f32.xlu0 %v435
  %v437 = vpop.xlane.xlu0 %436
  %vm438 = vcmp.eq.f32.partialorder %v435, %v437
  %v439 = vsel %vm438, %v434, inf
  %440 = vmin.xlane.f32.xlu0 %v439
  %v441 = vpop.xlane.xlu0 %440
  %v442 = vcvt.f32.s32 %v441
  %v443 = vcvt.f32.s32 %v437
  %v444 = vshll.u32 %v443, 16
  %v445 = vadd.s32 %v444, %v442
  %v446 = vsel %vm275, %v346, 2147483647
  %v447 = vand.u32 %v446, 65535
  %v448 = vshra.s32 %v446, 16
  %v449 = vcvt.s32.f32 %v447
  %v450 = vcvt.s32.f32 %v448
  %451 = vmin.xlane.f32.xlu0 %v450
  %v452 = vpop.xlane.xlu0 %451
  %vm453 = vcmp.eq.f32.partialorder %v450, %v452
  %v454 = vsel %vm453, %v449, inf
  %455 = vmin.xlane.f32.xlu0 %v454
  %v456 = vpop.xlane.xlu0 %455
  %v457 = vcvt.f32.s32 %v456
  %v458 = vcvt.f32.s32 %v452
  %v459 = vshll.u32 %v458, 16
  %v460 = vadd.s32 %v459, %v457
  %v461 = vsel %vm275, %v347, 2147483647
  %v462 = vand.u32 %v461, 65535
  %v463 = vshra.s32 %v461, 16
  %v464 = vcvt.s32.f32 %v462
  %v465 = vcvt.s32.f32 %v463
  %466 = vmin.xlane.f32.xlu0 %v465
  %v467 = vpop.xlane.xlu0 %466
  %vm468 = vcmp.eq.f32.partialorder %v465, %v467
  %v469 = vsel %vm468, %v464, inf
  %470 = vmin.xlane.f32.xlu0 %v469
  %v471 = vpop.xlane.xlu0 %470
  %v472 = vcvt.f32.s32 %v471
  %v473 = vcvt.f32.s32 %v467
  %v474 = vshll.u32 %v473, 16
  %v475 = vadd.s32 %v474, %v472
  %v476 = vsel %vm275, %v348, 2147483647
  %v477 = vand.u32 %v476, 65535
  %v478 = vshra.s32 %v476, 16
  %v479 = vcvt.s32.f32 %v477
  %v480 = vcvt.s32.f32 %v478
  %481 = vmin.xlane.f32.xlu0 %v480
  %v482 = vpop.xlane.xlu0 %481
  %vm483 = vcmp.eq.f32.partialorder %v480, %v482
  %v484 = vsel %vm483, %v479, inf
  %485 = vmin.xlane.f32.xlu0 %v484
  %v486 = vpop.xlane.xlu0 %485
  %v487 = vcvt.f32.s32 %v486
  %v488 = vcvt.f32.s32 %v482
  %v489 = vshll.u32 %v488, 16
  %v490 = vadd.s32 %v489, %v487
  %v491 = vsel %vm275, %v349, 2147483647
  %v492 = vand.u32 %v491, 65535
  %v493 = vshra.s32 %v491, 16
  %v494 = vcvt.s32.f32 %v492
  %v495 = vcvt.s32.f32 %v493
  %496 = vmin.xlane.f32.xlu0 %v495
  %v497 = vpop.xlane.xlu0 %496
  %vm498 = vcmp.eq.f32.partialorder %v495, %v497
  %v499 = vsel %vm498, %v494, inf
  %500 = vmin.xlane.f32.xlu0 %v499
  %v501 = vpop.xlane.xlu0 %500
  %v502 = vcvt.f32.s32 %v501
  %v503 = vcvt.f32.s32 %v497
  %v504 = vshll.u32 %v503, 16
  %v505 = vadd.s32 %v504, %v502
  %v506 = vsel %vm275, %v350, 2147483647
  %v507 = vand.u32 %v506, 65535
  %v508 = vshra.s32 %v506, 16
  %v509 = vcvt.s32.f32 %v507
  %v510 = vcvt.s32.f32 %v508
  %511 = vmin.xlane.f32.xlu0 %v510
  %v512 = vpop.xlane.xlu0 %511
  %vm513 = vcmp.eq.f32.partialorder %v510, %v512
  %v514 = vsel %vm513, %v509, inf
  %515 = vmin.xlane.f32.xlu0 %v514
  %v516 = vpop.xlane.xlu0 %515
  %v517 = vcvt.f32.s32 %v516
  %v518 = vcvt.f32.s32 %v512
  %v519 = vshll.u32 %v518, 16
  %v520 = vadd.s32 %v519, %v517
  %v521 = vsel %vm275, %v351, 2147483647
  %v522 = vand.u32 %v521, 65535
  %v523 = vshra.s32 %v521, 16
  %v524 = vcvt.s32.f32 %v522
  %v525 = vcvt.s32.f32 %v523
  %526 = vmin.xlane.f32.xlu0 %v525
  %v527 = vpop.xlane.xlu0 %526
  %vm528 = vcmp.eq.f32.partialorder %v525, %v527
  %v529 = vsel %vm528, %v524, inf
  %530 = vmin.xlane.f32.xlu0 %v529
  %v531 = vpop.xlane.xlu0 %530
  %v532 = vcvt.f32.s32 %v531
  %v533 = vcvt.f32.s32 %v527
  %v534 = vshll.u32 %v533, 16
  %v535 = vadd.s32 %v534, %v532
  %v536 = vsel %vm275, %v352, 2147483647
  %v537 = vand.u32 %v536, 65535
  %v538 = vshra.s32 %v536, 16
  %v539 = vcvt.s32.f32 %v537
  %v540 = vcvt.s32.f32 %v538
  %541 = vmin.xlane.f32.xlu0 %v540
  %v542 = vpop.xlane.xlu0 %541
  %vm543 = vcmp.eq.f32.partialorder %v540, %v542
  %v544 = vsel %vm543, %v539, inf
  %545 = vmin.xlane.f32.xlu0 %v544
  %v546 = vpop.xlane.xlu0 %545
  %v547 = vcvt.f32.s32 %v546
  %v548 = vcvt.f32.s32 %v542
  %v549 = vshll.u32 %v548, 16
  %v550 = vadd.s32 %v549, %v547
  %v551 = vsel %vm275, %v353, 2147483647
  %v552 = vand.u32 %v551, 65535
  %v553 = vshra.s32 %v551, 16
  %v554 = vcvt.s32.f32 %v552
  %v555 = vcvt.s32.f32 %v553
  %556 = vmin.xlane.f32.xlu0 %v555
  %v557 = vpop.xlane.xlu0 %556
  %vm558 = vcmp.eq.f32.partialorder %v555, %v557
  %v559 = vsel %vm558, %v554, inf
  %560 = vmin.xlane.f32.xlu0 %v559
  %v561 = vpop.xlane.xlu0 %560
  %v562 = vcvt.f32.s32 %v561
  %v563 = vcvt.f32.s32 %v557
  %v564 = vshll.u32 %v563, 16
  %v565 = vadd.s32 %v564, %v562
  %v566 = vsel %vm275, %v354, 2147483647
  %v567 = vand.u32 %v566, 65535
  %v568 = vshra.s32 %v566, 16
  %v569 = vcvt.s32.f32 %v567
  %v570 = vcvt.s32.f32 %v568
  %571 = vmin.xlane.f32.xlu0 %v570
  %v572 = vpop.xlane.xlu0 %571
  %vm573 = vcmp.eq.f32.partialorder %v570, %v572
  %v574 = vsel %vm573, %v569, inf
  %575 = vmin.xlane.f32.xlu0 %v574
  %v576 = vpop.xlane.xlu0 %575
  %v577 = vcvt.f32.s32 %v576
  %v578 = vcvt.f32.s32 %v572
  %v579 = vshll.u32 %v578, 16
  %v580 = vadd.s32 %v579, %v577
  %v581 = vsel %vm275, %v355, 2147483647
  %v582 = vand.u32 %v581, 65535
  %v583 = vshra.s32 %v581, 16
  %v584 = vcvt.s32.f32 %v582
  %v585 = vcvt.s32.f32 %v583
  %586 = vmin.xlane.f32.xlu0 %v585
  %v587 = vpop.xlane.xlu0 %586
  %vm588 = vcmp.eq.f32.partialorder %v585, %v587
  %v589 = vsel %vm588, %v584, inf
  %590 = vmin.xlane.f32.xlu0 %v589
  %v591 = vpop.xlane.xlu0 %590
  %v592 = vcvt.f32.s32 %v591
  %v593 = vcvt.f32.s32 %v587
  %v594 = vshll.u32 %v593, 16
  %v595 = vadd.s32 %v594, %v592
  %vm596 = vcmp.eq.s32.totalorder %v274, %v370
  %vm597 = vcmp.eq.s32.totalorder %v274, %v385
  %vm598 = vcmp.eq.s32.totalorder %v274, %v400
  %vm599 = vcmp.eq.s32.totalorder %v274, %v415
  %vm600 = vcmp.eq.s32.totalorder %v274, %v430
  %vm601 = vcmp.eq.s32.totalorder %v274, %v445
  %vm602 = vcmp.eq.s32.totalorder %v274, %v460
  %vm603 = vcmp.eq.s32.totalorder %v274, %v475
  %vm604 = vcmp.eq.s32.totalorder %v274, %v490
  %vm605 = vcmp.eq.s32.totalorder %v274, %v505
  %vm606 = vcmp.eq.s32.totalorder %v274, %v520
  %vm607 = vcmp.eq.s32.totalorder %v274, %v535
  %vm608 = vcmp.eq.s32.totalorder %v274, %v550
  %vm609 = vcmp.eq.s32.totalorder %v274, %v565
  %vm610 = vcmp.eq.s32.totalorder %v274, %v580
  %vm611 = vcmp.eq.s32.totalorder %v274, %v595
  %v612 = vsel %vm596, 1, 0
  %v613 = vsel %vm597, 1, 0
  %v614 = vsel %vm598, 1, 0
  %v615 = vsel %vm599, 1, 0
  %v616 = vsel %vm600, 1, 0
  %v617 = vsel %vm601, 1, 0
  %v618 = vsel %vm602, 1, 0
  %v619 = vsel %vm603, 1, 0
  %v620 = vsel %vm604, 1, 0
  %v621 = vsel %vm605, 1, 0
  %v622 = vsel %vm606, 1, 0
  %v623 = vsel %vm607, 1, 0
  %v624 = vsel %vm608, 1, 0
  %v625 = vsel %vm609, 1, 0
  %v626 = vsel %vm610, 1, 0
  %v627 = vsel %vm611, 1, 0
  %v628 = vcvt.s32.f32 %v612
  %v629 = vcvt.s32.f32 %v613
  %v630 = vcvt.s32.f32 %v614
  %v631 = vcvt.s32.f32 %v615
  %v632 = vcvt.s32.f32 %v616
  %v633 = vcvt.s32.f32 %v617
  %v634 = vcvt.s32.f32 %v618
  %v635 = vcvt.s32.f32 %v619
  %v636 = vcvt.s32.f32 %v620
  %v637 = vcvt.s32.f32 %v621
  %v638 = vcvt.s32.f32 %v622
  %v639 = vcvt.s32.f32 %v623
  %v640 = vcvt.s32.f32 %v624
  %v641 = vcvt.s32.f32 %v625
  %v642 = vcvt.s32.f32 %v626
  %v643 = vcvt.s32.f32 %v627
  %v645 = vsel %vm275, %v628, 0
  %v648 = vsel %vm275, %v629, 0
  %v651 = vsel %vm275, %v630, 0
  %v654 = vsel %vm275, %v631, 0
  %v657 = vsel %vm275, %v632, 0
  %v660 = vsel %vm275, %v633, 0
  %v663 = vsel %vm275, %v634, 0
  %v666 = vsel %vm275, %v635, 0
  %v669 = vsel %vm275, %v636, 0
  %v672 = vsel %vm275, %v637, 0
  %v675 = vsel %vm275, %v638, 0
  %v678 = vsel %vm275, %v639, 0
  %v681 = vsel %vm275, %v640, 0
  %v684 = vsel %vm275, %v641, 0
  %v687 = vsel %vm275, %v642, 0
  %v690 = vsel %vm275, %v643, 0
  %692 = vmatprep.subr.mxu0 0.0
  %693 = vmatpush1.msra.mxu0 0.0
  %694 = vmatprep.subr.mxu0 0.0
  %695 = vmatpush1.msra.mxu0 0.0
  %696 = vmatprep.subr.mxu0 0.0
  %697 = vmatpush1.msra.mxu0 0.0
  %698 = vmatprep.subr.mxu0 0.0
  %699 = vmatpush1.msra.mxu0 0.0
  %700 = vmatprep.subr.mxu0 0.0
  %701 = vmatpush1.msra.mxu0 0.0
  %702 = vmatprep.subr.mxu0 0.0
  %703 = vmatpush1.msra.mxu0 0.0
  %704 = vmatprep.subr.mxu0 0.0
  %705 = vmatpush1.msra.mxu0 0.0
  %706 = vmatprep.subr.mxu0 0.0
  %707 = vmatpush1.msra.mxu0 0.0
  %708 = vmatprep.subr.mxu0 0.0
  %709 = vmatpush1.msra.mxu0 0.0
  %710 = vmatprep.subr.mxu0 0.0
  %711 = vmatpush1.msra.mxu0 0.0
  %712 = vmatprep.subr.mxu0 0.0
  %713 = vmatpush1.msra.mxu0 0.0
  %714 = vmatprep.subr.mxu0 0.0
  %715 = vmatpush1.msra.mxu0 0.0
  %716 = vmatprep.subr.mxu0 0.0
  %717 = vmatpush1.msra.mxu0 0.0
  %718 = vmatprep.subr.mxu0 0.0
  %719 = vmatpush1.msra.mxu0 0.0
  %720 = vmatprep.subr.mxu0 0.0
  %721 = vmatpush1.msra.mxu0 %v33
  %722 = vmatprep.subr.mxu0 0.0
  %723 = vmatpush1.msra.mxu0 %v32
  %724 = vmatprep.subr.mxu0 0.0
  %725 = vmatpush2.msra.mxu0 0.0
  %726 = vmatprep.subr.mxu0 0.0
  %727 = vmatpush2.msra.mxu0 0.0
  %728 = vmatprep.subr.mxu0 0.0
  %729 = vmatpush2.msra.mxu0 0.0
  %730 = vmatprep.subr.mxu0 0.0
  %731 = vmatpush2.msra.mxu0 0.0
  %732 = vmatprep.subr.mxu0 0.0
  %733 = vmatpush2.msra.mxu0 0.0
  %734 = vmatprep.subr.mxu0 0.0
  %735 = vmatpush2.msra.mxu0 0.0
  %736 = vmatprep.subr.mxu0 0.0
  %737 = vmatpush2.msra.mxu0 0.0
  %738 = vmatprep.subr.mxu0 0.0
  %739 = vmatpush2.msra.mxu0 0.0
  %740 = vmatprep.subr.mxu0 0.0
  %741 = vmatpush2.msra.mxu0 0.0
  %742 = vmatprep.subr.mxu0 0.0
  %743 = vmatpush2.msra.mxu0 0.0
  %744 = vmatprep.subr.mxu0 0.0
  %745 = vmatpush2.msra.mxu0 0.0
  %746 = vmatprep.subr.mxu0 0.0
  %747 = vmatpush2.msra.mxu0 0.0
  %748 = vmatprep.subr.mxu0 0.0
  %749 = vmatpush2.msra.mxu0 0.0
  %750 = vmatprep.subr.mxu0 0.0
  %751 = vmatpush2.msra.mxu0 0.0
  %752 = vmatprep.subr.mxu0 0.0
  %753 = vmatpush2.msra.mxu0 0.0
  %754 = vmatprep.subr.mxu0 0.0
  %755 = vmatpush2.msra.mxu0 0.0
  %756 = vmatprep.mubr.f32.mxu0 0.0
  %757 = vmatmul.mubr.f32.gmra.mxu0 %v645
  %v758 = vpop.f32.mrf.mxu0
  %v759 = vadd.f32 0.0, %v758
  %v760 = vpop.f32.mrf.mxu0
  %761 = vmatprep.mubr.f32.mxu0 0.0
  %762 = vmatmul.mubr.f32.gmra.mxu0 %v648
  %v763 = vpop.f32.mrf.mxu0
  %v764 = vadd.f32 0.0, %v763
  %v765 = vpop.f32.mrf.mxu0
  %766 = vmatprep.mubr.f32.mxu0 0.0
  %767 = vmatmul.mubr.f32.gmra.mxu0 %v651
  %v768 = vpop.f32.mrf.mxu0
  %v769 = vadd.f32 0.0, %v768
  %v770 = vpop.f32.mrf.mxu0
  %771 = vmatprep.mubr.f32.mxu0 0.0
  %772 = vmatmul.mubr.f32.gmra.mxu0 %v654
  %v773 = vpop.f32.mrf.mxu0
  %v774 = vadd.f32 0.0, %v773
  %v775 = vpop.f32.mrf.mxu0
  %776 = vmatprep.mubr.f32.mxu0 0.0
  %777 = vmatmul.mubr.f32.gmra.mxu0 %v657
  %v778 = vpop.f32.mrf.mxu0
  %v779 = vadd.f32 0.0, %v778
  %v780 = vpop.f32.mrf.mxu0
  %781 = vmatprep.mubr.f32.mxu0 0.0
  %782 = vmatmul.mubr.f32.gmra.mxu0 %v660
  %v783 = vpop.f32.mrf.mxu0
  %v784 = vadd.f32 0.0, %v783
  %v785 = vpop.f32.mrf.mxu0
  %786 = vmatprep.mubr.f32.mxu0 0.0
  %787 = vmatmul.mubr.f32.gmra.mxu0 %v663
  %v788 = vpop.f32.mrf.mxu0
  %v789 = vadd.f32 0.0, %v788
  %v790 = vpop.f32.mrf.mxu0
  %791 = vmatprep.mubr.f32.mxu0 0.0
  %792 = vmatmul.mubr.f32.gmra.mxu0 %v666
  %v793 = vpop.f32.mrf.mxu0
  %v794 = vadd.f32 0.0, %v793
  %v795 = vpop.f32.mrf.mxu0
  %796 = vmatprep.mubr.f32.mxu0 0.0
  %797 = vmatmul.mubr.f32.gmra.mxu0 %v669
  %v798 = vpop.f32.mrf.mxu0
  %v799 = vadd.f32 0.0, %v798
  %v800 = vpop.f32.mrf.mxu0
  %801 = vmatprep.mubr.f32.mxu0 0.0
  %802 = vmatmul.mubr.f32.gmra.mxu0 %v672
  %v803 = vpop.f32.mrf.mxu0
  %v804 = vadd.f32 0.0, %v803
  %v805 = vpop.f32.mrf.mxu0
  %806 = vmatprep.mubr.f32.mxu0 0.0
  %807 = vmatmul.mubr.f32.gmra.mxu0 %v675
  %v808 = vpop.f32.mrf.mxu0
  %v809 = vadd.f32 0.0, %v808
  %v810 = vpop.f32.mrf.mxu0
  %811 = vmatprep.mubr.f32.mxu0 0.0
  %812 = vmatmul.mubr.f32.gmra.mxu0 %v678
  %v813 = vpop.f32.mrf.mxu0
  %v814 = vadd.f32 0.0, %v813
  %v815 = vpop.f32.mrf.mxu0
  %816 = vmatprep.mubr.f32.mxu0 0.0
  %817 = vmatmul.mubr.f32.gmra.mxu0 %v681
  %v818 = vpop.f32.mrf.mxu0
  %v819 = vadd.f32 0.0, %v818
  %v820 = vpop.f32.mrf.mxu0
  %821 = vmatprep.mubr.f32.mxu0 0.0
  %822 = vmatmul.mubr.f32.gmra.mxu0 %v684
  %v823 = vpop.f32.mrf.mxu0
  %v824 = vadd.f32 0.0, %v823
  %v825 = vpop.f32.mrf.mxu0
  %826 = vmatprep.mubr.f32.mxu0 0.0
  %827 = vmatmul.mubr.f32.gmra.mxu0 %v687
  %v828 = vpop.f32.mrf.mxu0
  %v829 = vadd.f32 0.0, %v828
  %v830 = vpop.f32.mrf.mxu0
  %831 = vmatprep.mubr.f32.mxu0 0.0
  %832 = vmatmul.mubr.f32.gmra.mxu0 %v690
  %v833 = vpop.f32.mrf.mxu0
  %v834 = vadd.f32 0.0, %v833
  %v835 = vpop.f32.mrf.mxu0
  %836 = vdwg.mxu0
  %837 = vst.msk [vmem:[%s3] sm:$0xff] %vm35, %v759
  %838 = vst.msk [vmem:[%s3 + $0x8] sm:$0xff] %vm35, %v764
  %839 = vst.msk [vmem:[%s3 + $0x10] sm:$0xff] %vm35, %v769
  %840 = vst.msk [vmem:[%s3 + $0x18] sm:$0xff] %vm35, %v774
  %841 = vst.msk [vmem:[%s3 + $0x20] sm:$0xff] %vm35, %v779
  %842 = vst.msk [vmem:[%s3 + $0x28] sm:$0xff] %vm35, %v784
  %843 = vst.msk [vmem:[%s3 + $0x30] sm:$0xff] %vm35, %v789
  %844 = vst.msk [vmem:[%s3 + $0x38] sm:$0xff] %vm35, %v794
  %845 = vst.msk [vmem:[%s3 + $0x40] sm:$0xff] %vm35, %v799
  %846 = vst.msk [vmem:[%s3 + $0x48] sm:$0xff] %vm35, %v804
  %847 = vst.msk [vmem:[%s3 + $0x50] sm:$0xff] %vm35, %v809
  %848 = vst.msk [vmem:[%s3 + $0x58] sm:$0xff] %vm35, %v814
  %849 = vst.msk [vmem:[%s3 + $0x60] sm:$0xff] %vm35, %v819
  %850 = vst.msk [vmem:[%s3 + $0x68] sm:$0xff] %vm35, %v824
  %851 = vst.msk [vmem:[%s3 + $0x70] sm:$0xff] %vm35, %v829
  %852 = vst.msk [vmem:[%s3 + $0x78] sm:$0xff] %vm35, %v834
  %v853 = vsub.f32 %v759, %v16
  %v854 = vsub.f32 %v764, %v17
  %v855 = vsub.f32 %v769, %v18
  %v856 = vsub.f32 %v774, %v19
  %v857 = vsub.f32 %v779, %v20
  %v858 = vsub.f32 %v784, %v21
  %v859 = vsub.f32 %v789, %v22
  %v860 = vsub.f32 %v794, %v23
  %v861 = vsub.f32 %v799, %v24
  %v862 = vsub.f32 %v804, %v25
  %v863 = vsub.f32 %v809, %v26
  %v864 = vsub.f32 %v814, %v27
  %v865 = vsub.f32 %v819, %v28
  %v866 = vsub.f32 %v824, %v29
  %v867 = vsub.f32 %v829, %v30
  %v868 = vsub.f32 %v834, %v31
  %v869 = vmul.f32 %v853, %v853
  %v870 = vmul.f32 %v854, %v854
  %v871 = vmul.f32 %v855, %v855
  %v872 = vmul.f32 %v856, %v856
  %v873 = vmul.f32 %v857, %v857
  %v874 = vmul.f32 %v858, %v858
  %v875 = vmul.f32 %v859, %v859
  %v876 = vmul.f32 %v860, %v860
  %v877 = vmul.f32 %v861, %v861
  %v878 = vmul.f32 %v862, %v862
  %v879 = vmul.f32 %v863, %v863
  %v880 = vmul.f32 %v864, %v864
  %v881 = vmul.f32 %v865, %v865
  %v882 = vmul.f32 %v866, %v866
  %v883 = vmul.f32 %v867, %v867
  %v884 = vmul.f32 %v868, %v868
  %v885 = vsel %vm35, %v869, 0.0
  %886 = vadd.xlane.f32.xlu0 %v885
  %v887 = vpop.xlane.xlu0 %886
  %v888 = vsel %vm35, %v870, 0.0
  %889 = vadd.xlane.f32.xlu0 %v888
  %v890 = vpop.xlane.xlu0 %889
  %v891 = vsel %vm35, %v871, 0.0
  %892 = vadd.xlane.f32.xlu0 %v891
  %v893 = vpop.xlane.xlu0 %892
  %v894 = vsel %vm35, %v872, 0.0
  %895 = vadd.xlane.f32.xlu0 %v894
  %v896 = vpop.xlane.xlu0 %895
  %v897 = vsel %vm35, %v873, 0.0
  %898 = vadd.xlane.f32.xlu0 %v897
  %v899 = vpop.xlane.xlu0 %898
  %v900 = vsel %vm35, %v874, 0.0
  %901 = vadd.xlane.f32.xlu0 %v900
  %v902 = vpop.xlane.xlu0 %901
  %v903 = vsel %vm35, %v875, 0.0
  %904 = vadd.xlane.f32.xlu0 %v903
  %v905 = vpop.xlane.xlu0 %904
  %v906 = vsel %vm35, %v876, 0.0
  %907 = vadd.xlane.f32.xlu0 %v906
  %v908 = vpop.xlane.xlu0 %907
  %v909 = vsel %vm35, %v877, 0.0
  %910 = vadd.xlane.f32.xlu0 %v909
  %v911 = vpop.xlane.xlu0 %910
  %v912 = vsel %vm35, %v878, 0.0
  %913 = vadd.xlane.f32.xlu0 %v912
  %v914 = vpop.xlane.xlu0 %913
  %v915 = vsel %vm35, %v879, 0.0
  %916 = vadd.xlane.f32.xlu0 %v915
  %v917 = vpop.xlane.xlu0 %916
  %v918 = vsel %vm35, %v880, 0.0
  %919 = vadd.xlane.f32.xlu0 %v918
  %v920 = vpop.xlane.xlu0 %919
  %v921 = vsel %vm35, %v881, 0.0
  %922 = vadd.xlane.f32.xlu0 %v921
  %v923 = vpop.xlane.xlu0 %922
  %v924 = vsel %vm35, %v882, 0.0
  %925 = vadd.xlane.f32.xlu0 %v924
  %v926 = vpop.xlane.xlu0 %925
  %v927 = vsel %vm35, %v883, 0.0
  %928 = vadd.xlane.f32.xlu0 %v927
  %v929 = vpop.xlane.xlu0 %928
  %v930 = vsel %vm35, %v884, 0.0
  %931 = vadd.xlane.f32.xlu0 %v930
  %v932 = vpop.xlane.xlu0 %931
  %vm933 = vcmask 7168
  %934 = vst.msk [vmem:[%s4] sm:$0xff] %vm933, %v887
  %935 = vst.msk [vmem:[%s4 + $0x8] sm:$0xff] %vm933, %v890
  %936 = vst.msk [vmem:[%s4 + $0x10] sm:$0xff] %vm933, %v893
  %937 = vst.msk [vmem:[%s4 + $0x18] sm:$0xff] %vm933, %v896
  %938 = vst.msk [vmem:[%s4 + $0x20] sm:$0xff] %vm933, %v899
  %939 = vst.msk [vmem:[%s4 + $0x28] sm:$0xff] %vm933, %v902
  %940 = vst.msk [vmem:[%s4 + $0x30] sm:$0xff] %vm933, %v905
  %941 = vst.msk [vmem:[%s4 + $0x38] sm:$0xff] %vm933, %v908
  %942 = vst.msk [vmem:[%s4 + $0x40] sm:$0xff] %vm933, %v911
  %943 = vst.msk [vmem:[%s4 + $0x48] sm:$0xff] %vm933, %v914
  %944 = vst.msk [vmem:[%s4 + $0x50] sm:$0xff] %vm933, %v917
  %945 = vst.msk [vmem:[%s4 + $0x58] sm:$0xff] %vm933, %v920
  %946 = vst.msk [vmem:[%s4 + $0x60] sm:$0xff] %vm933, %v923
  %947 = vst.msk [vmem:[%s4 + $0x68] sm:$0xff] %vm933, %v926
  %948 = vst.msk [vmem:[%s4 + $0x70] sm:$0xff] %vm933, %v929
  %949 = vst.msk [vmem:[%s4 + $0x78] sm:$0xff] %vm933, %v932
  // Predicated region
  $region14: #{vector_quantizer_forward.1} parent=0 // pred_check
    _
  $region15: #{vector_quantizer_forward.1} parent=0 // pred_check_branch
    %951 = sbr.rel (0) target = $region17
  $region16: #{vector_quantizer_forward.1} parent=0 // pred_region
    _
  $region17: #{vector_quantizer_forward.1} parent=0 // pred_fallthru
    _
  // Predicated region
  $region18: #{vector_quantizer_forward.1} parent=0 // pred_check
    _
  $region19: #{vector_quantizer_forward.1} parent=0 // pred_check_branch
    %953 = sbr.rel (0) target = $region21
  $region20: #{vector_quantizer_forward.1} parent=0 // pred_region
    _
  $region21: #{vector_quantizer_forward.1} parent=0 // pred_fallthru
    _
  // Predicated region
  $region22: #{vector_quantizer_forward.1} parent=0 // pred_check
    _
  $region23: #{vector_quantizer_forward.1} parent=0 // pred_check_branch
    %955 = sbr.rel (0) target = $region25
  $region24: #{vector_quantizer_forward.1} parent=0 // pred_region
    _
  $region25: #{vector_quantizer_forward.1} parent=0 // pred_fallthru
    _
  // Predicated region
  $region26: #{vector_quantizer_forward.1} parent=0 // pred_check
    _
  $region27: #{vector_quantizer_forward.1} parent=0 // pred_check_branch
    %957 = sbr.rel (0) target = $region29
  $region28: #{vector_quantizer_forward.1} parent=0 // pred_region
    _
  $region29: #{vector_quantizer_forward.1} parent=0 // pred_fallthru
    _

</llo_original>
